<compile_context>
chip_gen: v5e
topology: v5e:2x2
jax: 0.10.0
libtpu: 0.0.40
codegen_flags: <defaults>
</compile_context>

<pallas_src>
import jax
import jax.numpy as jnp
from jax.experimental import pallas as pl
from jax.experimental.pallas import tpu as pltpu


def _round_up(x, m):
    return ((x + m - 1) // m) * m


def _plan_tiles(n):
    """Pick (n_pad, tm, tk) so tiles divide n_pad and respect (8, 128)."""
    if n % 128 == 0:
        n_pad = n                       # aligned: no padded copy needed
    elif n <= 1024:
        n_pad = n                       # full-dim blocks: no padded copy needed
    else:
        n_pad = _round_up(n, 128)       # unavoidable pad (fused with bf16 cast)

    # k (lane / reduction) tile: multiple of 128 dividing n_pad, else full dim.
    tk = next((c for c in (4096, 2048, 1024, 512, 256, 128)
               if c <= n_pad and n_pad % c == 0), n_pad)
    # row (sublane) tile: multiple of 8 dividing n_pad; prefer grid[0] >= 2 so
    # the row axis can shard across v7x TensorCores.
    tm_cands = [c for c in (512, 256, 128, 64, 32, 16, 8)
                if c <= n_pad and n_pad % c == 0]
    tm = next((c for c in tm_cands if n_pad // c >= 2), n_pad)
    return n_pad, tm, tk


def gcn_dense_kernel(sup_ref, fw_ref, out_ref):
    """One (row-tile i, k-tile k) grid step.

    sup_ref : (tm, tk)       native dtype adjacency tile (cast to bf16 here)
    fw_ref  : (n_pad, c_pad) f32 fw = feat @ W, VMEM-resident (loaded once)
    out_ref : (tm, c_pad)    f32, resident across k -> used as the accumulator
    """
    i = pl.program_id(0)
    k = pl.program_id(1)
    tm, tk = sup_ref.shape

    @pl.when(k == 0)
    def _():
        out_ref[...] = jnp.zeros_like(out_ref)

    # sup @ fw partial sum on the MXU (bf16 feed, f32 accumulation).
    kstart = k * tk
    if tk % 8 == 0:
        kstart = pl.multiple_of(kstart, 8)
    fw_k = fw_ref[pl.ds(kstart, tk), :].astype(jnp.bfloat16)   # tiny VPU cast
    sup_t = sup_ref[...].astype(jnp.bfloat16)                  # free vs HBM DMA
    out_ref[...] += jnp.dot(sup_t, fw_k, preferred_element_type=jnp.float32)

    @pl.when(k == pl.num_programs(1) - 1)
    def _():
        # (sup + I) @ fw = sup @ fw + fw   (exact f32 row slice of resident fw)
        istart = i * tm
        if tm % 8 == 0:
            istart = pl.multiple_of(istart, 8)
        h = out_ref[...] + fw_ref[pl.ds(istart, tm), :]
        h = jnp.maximum(h, 0.0)                               # relu (VPU)
        sq = jnp.sum(h * h, axis=1, keepdims=True)            # XLU reduce
        # 1 / max(||h||, 1e-12)  ==  rsqrt(max(sq, 1e-24))    (EUP, no divide)
        inv = jax.lax.rsqrt(jnp.maximum(sq, 1e-24))
        out_ref[...] = h * inv

    # TODO(synk): nn.Dropout is identity at inference time; training-mode
    # dropout (pltpu.prng_seed / prng_random_bits masking) is not applied.


def gcn_dense(feat, sup, weight, *, tm=None, tk=None):
    n, cin = feat.shape
    assert sup.shape == (n, n), "sup must be (N, N)"
    assert weight.shape[0] == cin, "weight must be (Cin, Cout)"
    cout = weight.shape[1]
    f32 = jnp.float32

    n_pad, tm_d, tk_d = _plan_tiles(n)
    tm = tm_d if tm is None else tm
    tk = tk_d if tk is None else tk
    assert n_pad % tm == 0 and n_pad % tk == 0, "tiles must divide padded N"
    c_pad = _round_up(cout, 128)            # lane-dense fw / output width

    # ---- tiny precompute: fw = feat @ W (f32), padded to 128 lanes ----------
    fw = jnp.dot(feat.astype(f32), weight.astype(f32),
                 preferred_element_type=f32)                  # (N, Cout)
    if c_pad != cout or n_pad != n:
        fw = jnp.pad(fw, ((0, n_pad - n), (0, c_pad - cout)))

    # ---- sup: stream directly (no prepass) when tiles divide N exactly ------
    if n_pad != n:
        # Unavoidable pad: fuse it with the bf16 downcast (single extra pass,
        # halves both the written copy and the kernel's read bytes).
        sup_in = jnp.pad(sup, ((0, n_pad - n), (0, n_pad - n))).astype(jnp.bfloat16)
    else:
        sup_in = sup     # native dtype (f32 or bf16); per-tile cast in-kernel

    grid = (n_pad // tm, n_pad // tk)
    sup_item = jnp.dtype(sup_in.dtype).itemsize

    cost = pl.CostEstimate(
        flops=2 * n_pad * n_pad * c_pad,
        transcendentals=n_pad,                         # one rsqrt per row
        bytes_accessed=(n_pad * n_pad * sup_item       # sup streamed once
                        + n_pad * c_pad * 4            # fw loaded once (resident)
                        + n_pad * c_pad * 4),          # output writeback
    )

    # Generation-tuned scoped VMEM limit: ~48 MiB on v7x (64 MiB physical),
    # ~96 MiB on v5e/v6e (128 MiB physical).
    try:
        vmem_cap = pltpu.get_tpu_info().vmem_capacity_bytes
    except Exception:
        vmem_cap = 64 * 1024 * 1024
    vmem_limit = int(min((vmem_cap * 3) // 4, 100 * 1024 * 1024))

    out = pl.pallas_call(
        gcn_dense_kernel,
        out_shape=jax.ShapeDtypeStruct((n_pad, c_pad), f32),
        grid=grid,
        in_specs=[
            pl.BlockSpec((tm, tk), lambda i, k: (i, k)),        # sup tile stream
            pl.BlockSpec((n_pad, c_pad), lambda i, k: (0, 0)),  # fw, VMEM-resident
        ],
        out_specs=pl.BlockSpec((tm, c_pad), lambda i, k: (i, 0)),
        compiler_params=pltpu.CompilerParams(
            dimension_semantics=("parallel", "arbitrary"),
            vmem_limit_bytes=vmem_limit,
        ),
        cost_estimate=cost,
    )(sup_in, fw)

    return out[:n, :cout]


def xavier_uniform(key, fan_in, fan_out, dtype=jnp.float32):
    bound = (6.0 / (fan_in + fan_out)) ** 0.5
    return jax.random.uniform(key, (fan_in, fan_out), dtype=dtype,
                              minval=-bound, maxval=bound)


if __name__ == "__main__":
    key = jax.random.PRNGKey(0)
    k_feat, k_sup, k_w = jax.random.split(key, 3)

    num_nodes = 8
    input_dim = 16
    output_dim = 32
    dropout_rate = 0.1  # unused at inference

    feat = jax.random.normal(k_feat, (num_nodes, input_dim), dtype=jnp.float32)
    # a plausible symmetric "normalized adjacency"
    a = jax.random.uniform(k_sup, (num_nodes, num_nodes), dtype=jnp.float32)
    sup = (a + a.T) * 0.5 / num_nodes
    weight = xavier_uniform(k_w, input_dim, output_dim)

    out = gcn_dense(feat, sup, weight)
    out = jax.block_until_ready(out)

    # sanity check against plain-JAX f32 reference (kernel uses bf16 MXU feed,
    # so tolerance is bf16-level)
    sup_i = sup + jnp.eye(num_nodes, dtype=sup.dtype)
    h_ref = jnp.maximum(sup_i @ feat @ weight, 0.0)
    ref = h_ref / jnp.maximum(
        jnp.sqrt(jnp.sum(h_ref * h_ref, axis=1, keepdims=True)), 1e-12)

    assert out.shape == (num_nodes, output_dim)
    err = float(jnp.max(jnp.abs(out - ref)))
    assert jnp.allclose(out, ref, atol=3e-2, rtol=3e-2), f"max abs err {err}"

    print("KERNEL_OK")
</pallas_src>

<mosaic_0001>
module attributes {stable_mosaic.version = 11 : i64} {
  func.func @gcn_dense_kernel(%arg0: i32, %arg1: i32, %arg2: memref<8x8xf32, #tpu.memory_space<vmem>>, %arg3: memref<8x128xf32, #tpu.memory_space<vmem>>, %arg4: memref<8x128xf32, #tpu.memory_space<vmem>>) attributes {dimension_semantics = [#tpu.dimension_semantics<parallel>, #tpu.dimension_semantics<arbitrary>], iteration_bounds = array<i64: 1, 1>, scalar_prefetch = 0 : i64, scratch_operands = 0 : i64, tpu.core_type = #tpu.core_type<tc>, window_params = [{transform_indices = @transform_0, window_bounds = array<i64: 8, 8>}, {pipeline_mode = #tpu.pipeline_mode<synchronous>, transform_indices = @transform_1, window_bounds = array<i64: 8, 128>}, {transform_indices = @transform_2, window_bounds = array<i64: 8, 128>}]} {
    %c0_i32 = arith.constant 0 : i32
    %0 = arith.cmpi eq, %arg1, %c0_i32 : i32
    %1 = arith.extui %0 : i1 to i32
    %c0_i32_0 = arith.constant 0 : i32
    %2 = arith.cmpi ne, %1, %c0_i32_0 : i32
    scf.if %2 {
      %cst_9 = arith.constant 0.000000e+00 : f32
      %17 = vector.broadcast %cst_9 : f32 to vector<8x128xf32>
      %c0_10 = arith.constant 0 : index
      %c0_11 = arith.constant 0 : index
      %18 = vector.load %arg4[%c0_10, %c0_11] : memref<8x128xf32, #tpu.memory_space<vmem>>, vector<8x128xf32>
      tpu.vector_store %arg4[%c0_10, %c0_11], %17 {strides = array<i32>} : memref<8x128xf32, #tpu.memory_space<vmem>>, vector<8x128xf32>,
    } else {
    }
    %c8_i32 = arith.constant 8 : i32
    %3 = arith.muli %arg1, %c8_i32 : i32
    %4 = tpu.assume_multiple %3, 8 : i32
    %5 = arith.index_cast %4 : i32 to index
    %c0 = arith.constant 0 : index
    %6 = vector.load %arg3[%5, %c0] : memref<8x128xf32, #tpu.memory_space<vmem>>, vector<8x128xf32>
    %7 = arith.truncf %6 : vector<8x128xf32> to vector<8x128xbf16>
    %c0_1 = arith.constant 0 : index
    %c0_2 = arith.constant 0 : index
    %8 = vector.load %arg2[%c0_1, %c0_2] : memref<8x8xf32, #tpu.memory_space<vmem>>, vector<8x8xf32>
    %9 = arith.truncf %8 : vector<8x8xf32> to vector<8x8xbf16>
    %c0_3 = arith.constant 0 : index
    %c0_4 = arith.constant 0 : index
    %10 = vector.load %arg4[%c0_3, %c0_4] : memref<8x128xf32, #tpu.memory_space<vmem>>, vector<8x128xf32>
    %cst = arith.constant dense<0.000000e+00> : vector<8x128xf32>
    %11 = tpu.matmul %9, %7, %cst {dimension_numbers = #tpu.dot_dimension_numbers<[1], [0], [0], [1], [0, 0, 1, 1], [], []>} : vector<8x8xbf16>, vector<8x128xbf16>, vector<8x128xf32> -> vector<8x128xf32>
    %12 = arith.addf %10, %11 : vector<8x128xf32>
    %c0_5 = arith.constant 0 : index
    %c0_6 = arith.constant 0 : index
    %13 = vector.load %arg4[%c0_5, %c0_6] : memref<8x128xf32, #tpu.memory_space<vmem>>, vector<8x128xf32>
    tpu.vector_store %arg4[%c0_5, %c0_6], %12 {strides = array<i32>} : memref<8x128xf32, #tpu.memory_space<vmem>>, vector<8x128xf32>,
    %c0_i32_7 = arith.constant 0 : i32
    %14 = arith.cmpi eq, %arg1, %c0_i32_7 : i32
    %15 = arith.extui %14 : i1 to i32
    %c0_i32_8 = arith.constant 0 : i32
    %16 = arith.cmpi ne, %15, %c0_i32_8 : i32
    scf.if %16 {
      %c8_i32_9 = arith.constant 8 : i32
      %17 = arith.muli %arg0, %c8_i32_9 : i32
      %18 = tpu.assume_multiple %17, 8 : i32
      %c0_10 = arith.constant 0 : index
      %c0_11 = arith.constant 0 : index
      %19 = vector.load %arg4[%c0_10, %c0_11] : memref<8x128xf32, #tpu.memory_space<vmem>>, vector<8x128xf32>
      %20 = arith.index_cast %18 : i32 to index
      %c0_12 = arith.constant 0 : index
      %21 = vector.load %arg3[%20, %c0_12] : memref<8x128xf32, #tpu.memory_space<vmem>>, vector<8x128xf32>
      %22 = arith.addf %19, %21 : vector<8x128xf32>
      %cst_13 = arith.constant 0.000000e+00 : f32
      %23 = vector.broadcast %cst_13 : f32 to vector<8x128xf32>
      %24 = arith.maximumf %22, %23 : vector<8x128xf32>
      %25 = arith.mulf %24, %24 : vector<8x128xf32>
      %cst_14 = arith.constant dense<0.000000e+00> : vector<8xf32>
      %26 = vector.multi_reduction <add>, %25, %cst_14 [1] : vector<8x128xf32> to vector<8xf32>
      %27 = vector.shape_cast %26 : vector<8xf32> to vector<8x1xf32>
      %cst_15 = arith.constant 1.000000e-24 : f32
      %28 = vector.broadcast %cst_15 : f32 to vector<8x1xf32>
      %29 = arith.maximumf %27, %28 : vector<8x1xf32>
      %30 = math.rsqrt %29 : vector<8x1xf32>
      %31 = vector.broadcast %30 : vector<8x1xf32> to vector<8x128xf32>
      %32 = arith.mulf %24, %31 : vector<8x128xf32>
      %c0_16 = arith.constant 0 : index
      %c0_17 = arith.constant 0 : index
      %33 = vector.load %arg4[%c0_16, %c0_17] : memref<8x128xf32, #tpu.memory_space<vmem>>, vector<8x128xf32>
      tpu.vector_store %arg4[%c0_16, %c0_17], %32 {strides = array<i32>} : memref<8x128xf32, #tpu.memory_space<vmem>>, vector<8x128xf32>,
    } else {
    }
    return
  }
  func.func @transform_0(%arg0: i32, %arg1: i32) -> (i32, i32) {
    %c0_i32 = arith.constant 0 : i32
    return %arg0, %arg1 : i32, i32
  }
  func.func @transform_1(%arg0: i32, %arg1: i32) -> (i32, i32) {
    %c0_i32 = arith.constant 0 : i32
    %c0_i32_0 = arith.constant 0 : i32
    %c0_i32_1 = arith.constant 0 : i32
    return %c0_i32, %c0_i32_0 : i32, i32
  }
  func.func @transform_2(%arg0: i32, %arg1: i32) -> (i32, i32) {
    %c0_i32 = arith.constant 0 : i32
    %c0_i32_0 = arith.constant 0 : i32
    return %arg0, %c0_i32 : i32, i32
  }
}

</mosaic_0001>

<llo_original>
// kernel: tpu_custom_call.1
$region0: #{tpu_custom_call.1}
  #allocation0 [shape = 'u32[]', space=smem, size = 0x4, offset = 0x4, fixed_abs, tag = 'smem constant byte address 0x4 - core index']
  #allocation1 [shape = 'u32[72,128]{1,0:T(1,128)}', space=vmem, size = 0x9000, scoped, tag = 'internal scratch']
  %s0 = inlined_call_operand.hbm [shape: f32[8,8], index: 0, kind: input, shape index: {}]
  %s1 = inlined_call_operand.hbm [shape: f32[8,128], index: 1, kind: input, shape index: {}]
  %s2 = inlined_call_operand.hbm [shape: f32[8,128], index: 2, kind: output, shape index: {}]
  %s3 = sld [smem:[#allocation0]]
  $region34: #{tpu_custom_call.1} parent=0
    _
  %s5 = ssub.s32 1, %s3
  %s6 = scalar_select 0, %s5, %s3
  $region1: #{tpu_custom_call.1} parent=0
    #allocation2 [shape = 'u8[4096]{0}', space=vmem, size = 0x1000, scoped, tag = 'input window, operand 0, single buffered']
    #allocation3 [shape = 's32[1]{0}', space=sflag, size = 0x4, scoped, tag = 'scoped memory for tpu_custom_call.1']
    #allocation4 [shape = 's32[1]{0}', space=sflag, size = 0x4, scoped, tag = 'scoped memory for tpu_custom_call.1']
    #allocation5 [shape = 'u8[4096]{0}', space=vmem, size = 0x1000, scoped, tag = 'input window, operand 1, single buffered']
    #allocation6 [shape = 's32[1]{0}', space=sflag, size = 0x4, scoped, tag = 'scoped memory for tpu_custom_call.1']
    #allocation7 [shape = 'u8[4096]{0}', space=vmem, size = 0x1000, scoped, tag = 'output window, operand 0, single buffered']
    %7 = vsyncpa [#allocation3], 0
    %8 = vsyncpa [#allocation6], 0
    %9 = vsyncpa [#allocation4], 0
    // Predicated region
    $region2: #{tpu_custom_call.1} parent=1 // pred_check
      _
    $region3: #{tpu_custom_call.1} parent=1 // pred_check_branch
      %11 = sbr.rel (0) target = $region5
    $region4: #{tpu_custom_call.1} parent=1 // pred_region
      %13 = vsyncadd [#allocation3], 0
      %s15 = sshll.u32 %s0, 4
      %s16 = int_to_ptr.hbm [resolvable:$true] %s15
      %s17 = sshll.u32 [#allocation2], 4
      %s18 = int_to_ptr.vmem [resolvable:$true] %s17
      %20 = dma.hbm_to_vmem [thread:$0]  %s16, 128, %s18, [#allocation3]
    $region5: #{tpu_custom_call.1} parent=1 // pred_fallthru
      _
    // Predicated region
    $region6: #{tpu_custom_call.1} parent=1 // pred_check
      _
    $region7: #{tpu_custom_call.1} parent=1 // pred_check_branch
      %22 = sbr.rel (0) target = $region9
    $region8: #{tpu_custom_call.1} parent=1 // pred_region
      %24 = vsyncadd [#allocation6], 0
      %s26 = sshll.u32 %s1, 4
      %s27 = int_to_ptr.hbm [resolvable:$true] %s26
      %s28 = sshll.u32 [#allocation5], 4
      %s29 = int_to_ptr.vmem [resolvable:$true] %s28
      %31 = dma.hbm_to_vmem [thread:$0]  %s27, 128, %s29, [#allocation6]
    $region9: #{tpu_custom_call.1} parent=1 // pred_fallthru
      _
    // Predicated region
    $region10: #{tpu_custom_call.1} parent=1 // pred_check
      _
    $region11: #{tpu_custom_call.1} parent=1 // pred_check_branch
      %33 = sbr.rel (0) target = $region13
    $region12: #{tpu_custom_call.1} parent=1 // pred_region
      %35 = dma.done [#allocation3], 128
    $region13: #{tpu_custom_call.1} parent=1 // pred_fallthru
      _
    // Predicated region
    $region14: #{tpu_custom_call.1} parent=1 // pred_check
      _
    $region15: #{tpu_custom_call.1} parent=1 // pred_check_branch
      %37 = sbr.rel (0) target = $region17
    $region16: #{tpu_custom_call.1} parent=1 // pred_region
      %39 = dma.done [#allocation6], 128
    $region17: #{tpu_custom_call.1} parent=1 // pred_fallthru
      _
    %p41 = scmp.eq.s32.totalorder 0, 0
    // Predicated region
    $region18: #{tpu_custom_call.1} parent=1 // pred_check
      %p42 = pneg %p41
    $region19: #{tpu_custom_call.1} parent=1 // pred_check_branch
      %44 = sbr.rel (%p42) target = $region21
    $region20: #{tpu_custom_call.1} parent=1 // pred_region
      %45 = vst [vmem:[#allocation7] sm:$0xff] 0.0
    $region21: #{tpu_custom_call.1} parent=1 // pred_fallthru
      _
    %s46 = smul.u32 0, 8
    %s47 = scalar_lea.vmem [#allocation5], %s46
    %v48 = vld [vmem:[%s47] sm:$0xff]
    %v49 = vpack.c.bf16 %v48, %v48
    %v50 = vld [vmem:[#allocation2] sm:$0xff]
    %v51 = vpack.c.bf16 %v50, %v50
    %v52 = vld [vmem:[#allocation7] sm:$0xff]
    %vm53 = vcmask 64512
    %v55 = vsel %vm53, %v51, 0
    %vm57 = vcmask 1043456
    %v59 = vsel %vm57, %v49, 0
    %61 = vmatpush.bf16.msra.mxu0 0
    %62 = vmatpush.bf16.msra.mxu0 0
    %63 = vmatpush.bf16.msra.mxu0 0
    %64 = vmatpush.bf16.msra.mxu0 0
    %65 = vmatpush.bf16.msra.mxu0 0
    %66 = vmatpush.bf16.msra.mxu0 0
    %67 = vmatpush.bf16.msra.mxu0 0
    %68 = vmatpush.bf16.msra.mxu0 %v59
    %69 = vmatmul.bf16.gmra.mxu0 %v55
    %v70 = vpop.f32.mrf.mxu0
    %v71 = vadd.f32 0.0, %v70
    %v72 = vpop.f32.mrf.mxu0
    %73 = vdwg.mxu0
    %v74 = vadd.f32 %v52, %v71
    %75 = vst [vmem:[#allocation7] sm:$0xff] %v74
    // Predicated region
    $region22: #{tpu_custom_call.1} parent=1 // pred_check
      %p76 = pneg %p41
    $region23: #{tpu_custom_call.1} parent=1 // pred_check_branch
      %78 = sbr.rel (%p76) target = $region25
    $region24: #{tpu_custom_call.1} parent=1 // pred_region
      %s79 = smul.u32 0, 8
      %v80 = vld [vmem:[#allocation7] sm:$0xff]
      %s81 = scalar_lea.vmem [#allocation5], %s79
      %v82 = vld [vmem:[%s81] sm:$0xff]
      %v83 = vadd.f32 %v80, %v82
      %v84 = vmax.f32 %v83, 0.0
      %v85 = vmul.f32 %v84, %v84
      %86 = vadd.xlane.f32.xlu0 %v85
      %v87 = vpop.xlane.xlu0 %86
      %v88 = vmax.f32 %v87, 1e-24
      %v89 = vrsqrt.pop %v88
      %v90 = vmul.f32 %v89, %v88
      %v91 = vmul.f32 %v90, %v89
      %v92 = vmul.f32 0.5, %v91
      %v93 = vsub.f32 1.5, %v92
      %v94 = vmul.f32 %v89, %v93
      %vm95 = vweird.f32 %v88
      %vm96 = vweird.f32 %v89
      %vm97 = vmor %vm95, %vm96
      %v98 = vsel %vm97, %v89, %v94
      %v99 = vmul.f32 %v84, %v98
      %100 = vst [vmem:[#allocation7] sm:$0xff] %v99
    $region25: #{tpu_custom_call.1} parent=1 // pred_fallthru
      _
    // Predicated region
    $region26: #{tpu_custom_call.1} parent=1 // pred_check
      _
    $region27: #{tpu_custom_call.1} parent=1 // pred_check_branch
      %102 = sbr.rel (0) target = $region29
    $region28: #{tpu_custom_call.1} parent=1 // pred_region
      %104 = vsyncadd [#allocation4], 0
      %s106 = sshll.u32 [#allocation7], 4
      %s107 = int_to_ptr.vmem [resolvable:$true] %s106
      %s108 = sshll.u32 %s2, 4
      %s109 = int_to_ptr.hbm [resolvable:$true] %s108
      %111 = dma.vmem_to_hbm [thread:$0]  %s107, 128, %s109, [#allocation4]
    $region29: #{tpu_custom_call.1} parent=1 // pred_fallthru
      _
    // Predicated region
    $region30: #{tpu_custom_call.1} parent=1 // pred_check
      _
    $region31: #{tpu_custom_call.1} parent=1 // pred_check_branch
      %113 = sbr.rel (0) target = $region33
    $region32: #{tpu_custom_call.1} parent=1 // pred_region
      %115 = dma.done [#allocation4], 128
    $region33: #{tpu_custom_call.1} parent=1 // pred_fallthru
      _
    %116 = vsyncpa [#allocation3], 1
    %117 = vsyncpa [#allocation6], 1
    %118 = vsyncpa [#allocation4], 1

</llo_original>
